<compile_context>
chip_gen: v5e
topology: v5e:2x2
jax: 0.10.0
libtpu: 0.0.40
codegen_flags: <defaults>
</compile_context>

<pallas_src>
import functools

import jax
import jax.numpy as jnp
from jax.experimental import pallas as pl
from jax.experimental.pallas import tpu as pltpu


def _round_up(x, m):
    return ((x + m - 1) // m) * m


def _vmem_target_bytes():
    """~2/3 of physical VMEM (generation-aware); conservative 64 MiB fallback."""
    phys = None
    try:
        phys = getattr(pltpu.get_tpu_info(), "vmem_capacity_bytes", None)
    except Exception:
        phys = None
    if not phys:
        phys = 64 << 20            # v7x per-TC physical; safe on every generation
    return int(min(phys * 2 // 3, 100 << 20))


def aggregate_kernel(va_ref, vb_ref, w1a_ref, w1b_ref, b1_ref, w2_ref, b2_ref,
                     w3_ref, b3_ref, out_ref, acc_a_ref, acc_b_ref, *,
                     len_a, len_b, mask_a, mask_b):
    k = pl.program_id(1)

    @pl.when(k == 0)
    def _init():
        acc_a_ref[...] = jnp.zeros_like(acc_a_ref)
        acc_b_ref[...] = jnp.zeros_like(acc_b_ref)

    va = va_ref[...]                                    # (TB, LTa, D)
    vb = vb_ref[...]                                    # (TB, LTb, D)
    # Ragged seq tails: edge blocks read unspecified out-of-bounds data, so zero
    # any row whose global seq index >= the true length BEFORE accumulating.
    if mask_a:
        lta = va.shape[1]
        rows = jax.lax.broadcasted_iota(jnp.int32, (1, lta, 1), 1) + k * lta
        va = jnp.where(rows < len_a, va, 0.0)
    if mask_b:
        ltb = vb.shape[1]
        rows = jax.lax.broadcasted_iota(jnp.int32, (1, ltb, 1), 1) + k * ltb
        vb = jnp.where(rows < len_b, vb, 0.0)

    # Partial sequence-sum pooling (PyTorch .sum(dim=1)).
    acc_a_ref[...] += jnp.sum(va, axis=1)
    acc_b_ref[...] += jnp.sum(vb, axis=1)

    # The (tiny) MLP head runs once per batch tile, on the last seq step.
    @pl.when(k == pl.num_programs(1) - 1)
    def _finalize():
        sa = acc_a_ref[...]                             # (TB, D) f32
        sb = acc_b_ref[...]                             # (TB, D) f32
        # concat([sa, sb], -1) @ W1 == sa @ W1a + sb @ W1b  (no lane-dim concat).
        h1 = (jnp.dot(sa, w1a_ref[...], preferred_element_type=jnp.float32)
              + jnp.dot(sb, w1b_ref[...], preferred_element_type=jnp.float32)
              + b1_ref[...])
        h1 = jnp.maximum(h1, 0.0)
        h2 = jnp.dot(h1, w2_ref[...], preferred_element_type=jnp.float32) + b2_ref[...]
        h2 = jnp.maximum(h2, 0.0)
        y = jnp.dot(h2, w3_ref[...], preferred_element_type=jnp.float32) + b3_ref[...]
        out_ref[...] = y.astype(out_ref.dtype)


def prepare_params(params, feat_dim):
    """One-time parameter prep, hoisted out of the per-call path.

    Splits W1 so the kernel never concatenates along the lane dim and pads the
    classifier (W3, b3) to 128 output lanes for an unmasked, lane-dense store.
    """
    w1, b1, w2, b2, w3, b3 = params
    D = feat_dim
    assert w1.shape[0] == 2 * D
    num_outputs = w3.shape[1]
    NP = _round_up(max(num_outputs, 1), 128)
    return dict(
        w1a=jnp.asarray(w1[:D], jnp.float32),
        w1b=jnp.asarray(w1[D:], jnp.float32),
        b1=jnp.asarray(b1, jnp.float32),
        w2=jnp.asarray(w2, jnp.float32),
        b2=jnp.asarray(b2, jnp.float32),
        w3p=jnp.pad(jnp.asarray(w3, jnp.float32), ((0, 0), (0, NP - num_outputs))),
        b3p=jnp.pad(jnp.asarray(b3, jnp.float32), ((0, 0), (0, NP - num_outputs))),
        num_outputs=num_outputs,
    )


def aggregate(V_A, V_B, prepared, *, batch_tile=None, seq_tile_cap=None,
              min_step_bytes=1 << 20):
    """V_A: (B, La, D) f32, V_B: (B, Lb, D) f32 -> (B, num_outputs) f32."""
    B, La, D = V_A.shape
    Bb, Lb, Db = V_B.shape
    assert Bb == B and Db == D
    w1a, w1b = prepared["w1a"], prepared["w1b"]
    b1, w2, b2 = prepared["b1"], prepared["w2"], prepared["b2"]
    w3p, b3p = prepared["w3p"], prepared["b3p"]
    num_outputs = prepared["num_outputs"]
    assert w1a.shape[0] == D
    H = w1a.shape[1]
    NP = w3p.shape[1]
    itemsize = 4  # f32

    # ---- Generation-aware VMEM budget. Weights are budgeted at 2x (double
    # buffered) even though they request single-buffering below, so the tiling
    # plan stays safe even if pipeline_mode is unavailable in this build.
    w_bytes = (2 * D * H + H * H + H * NP + 2 * H + NP) * itemsize
    target = _vmem_target_bytes()
    io_budget = max(target - 2 * w_bytes - (2 << 20), 4 << 20)

    # ---- Batch tiling: >= 2 "parallel" tiles whenever B > 8 (v7x has 2 TCs
    # sharding the parallel axis), multiple-of-8 tiles, capped by VMEM budget.
    if batch_tile is not None:
        TB = B if batch_tile >= B else max(8, (int(batch_tile) // 8) * 8)
    else:
        TB = B if B <= 8 else min(_round_up(pl.cdiv(B, 2), 8), 1024)
        if B > 8:
            # Smallest per-batch-row footprint: dbuf output + accumulators +
            # one 8-row seq tile per stream, double buffered.
            row_min = (2 * NP + 2 * D + 2 * 2 * 8 * D) * itemsize
            TB = min(TB, max(8, (io_budget // row_min) // 8 * 8))
    nb = pl.cdiv(B, TB)

    # ---- Sequence tiling: auto mode takes the largest seq tiles that fit the
    # remaining budget (fewer grid steps, bigger DMAs); explicit seq_tile_cap is
    # honored but clamped by a per-step DMA-size floor (v5e step-overhead guard).
    fixed = (2 * TB * NP + 2 * TB * D) * itemsize
    rows_budget = max(io_budget - fixed, 1 << 20)
    rows_fit = max(16, rows_budget // (2 * TB * D * itemsize))   # La+Lb rows/step
    nk_vmem = max(1, pl.cdiv(La + Lb, rows_fit))
    nk = nk_vmem
    if seq_tile_cap is not None:
        nk = max(nk, pl.cdiv(max(La, Lb), max(1, int(seq_tile_cap))))
    if min_step_bytes and nk > 1:
        nk_floor = max(1, (TB * (La + Lb) * D * itemsize) // int(min_step_bytes))
        nk = max(nk_vmem, min(nk, nk_floor))

    def seq_tile(L):
        if nk <= 1:
            return L
        t = _round_up(pl.cdiv(L, nk), 8)           # sublane-aligned tile
        return t if t <= L else L                  # full-dim block is always legal

    LTa, LTb = seq_tile(La), seq_tile(Lb)
    mask_a = (nk * LTa != La)                      # static: does any block overhang?
    mask_b = (nk * LTb != Lb)

    # ---- VMEM limit always covers the derived need (no undershooting cap).
    in_bytes = 2 * TB * (LTa + LTb) * D * itemsize          # double-buffered inputs
    need = in_bytes + 2 * w_bytes + (2 * TB * NP + 2 * TB * D) * itemsize
    vmem_limit = int(min(max(need + (2 << 20), 16 << 20), 128 << 20))

    flops = 2 * B * ((La + Lb) * D + 2 * D * H + H * H + H * num_outputs)
    bytes_accessed = (B * (La + Lb) * D + B * NP) * itemsize + w_bytes
    cost = pl.CostEstimate(flops=flops, transcendentals=0,
                           bytes_accessed=int(bytes_accessed))

    kernel = functools.partial(aggregate_kernel, len_a=La, len_b=Lb,
                               mask_a=mask_a, mask_b=mask_b)

    def build(single_buffer_weights):
        def const_spec(shape):
            idx = lambda i, k, _s=shape: (0,) * len(_s)
            if single_buffer_weights:
                # Grid-invariant weights are never re-fetched; one VMEM buffer
                # is enough (saves resident VMEM, most important on v7x).
                return pl.BlockSpec(shape, idx, pipeline_mode=pl.Buffered(1))
            return pl.BlockSpec(shape, idx)

        grid_spec = pltpu.PrefetchScalarGridSpec(
            num_scalar_prefetch=0,
            grid=(nb, nk),
            in_specs=[
                pl.BlockSpec((TB, LTa, D), lambda i, k: (i, k, 0)),   # V_A tile
                pl.BlockSpec((TB, LTb, D), lambda i, k: (i, k, 0)),   # V_B tile
                const_spec((D, H)),                                   # W1a
                const_spec((D, H)),                                   # W1b
                const_spec((1, H)),                                   # b1
                const_spec((H, H)),                                   # W2
                const_spec((1, H)),                                   # b2
                const_spec((H, NP)),                                  # W3 (padded)
                const_spec((1, NP)),                                  # b3 (padded)
            ],
            out_specs=pl.BlockSpec((TB, NP), lambda i, k: (i, 0)),
            scratch_shapes=[pltpu.VMEM((TB, D), jnp.float32),
                            pltpu.VMEM((TB, D), jnp.float32)],
        )
        return pl.pallas_call(
            kernel,
            out_shape=jax.ShapeDtypeStruct((B, NP), jnp.float32),
            grid_spec=grid_spec,
            compiler_params=pltpu.CompilerParams(
                dimension_semantics=("parallel", "arbitrary"),
                vmem_limit_bytes=vmem_limit),
            cost_estimate=cost,
        )

    use_single = hasattr(pl, "Buffered")
    try:
        out = build(use_single)(V_A, V_B, w1a, w1b, b1, w2, b2, w3p, b3p)
    except Exception:
        if not use_single:
            raise
        # pipeline_mode=Buffered(1) not supported by this build/lowering:
        # fall back to default (double-buffered) weight specs.
        out = build(False)(V_A, V_B, w1a, w1b, b1, w2, b2, w3p, b3p)

    return out[:, :num_outputs]


def init_params(key, num_inputs, num_hiddens, num_outputs):
    """Deterministic synthetic parameters; weights stored (in, out)."""
    ks = jax.random.split(key, 6)
    scale = 0.1
    w1 = scale * jax.random.normal(ks[0], (num_inputs, num_hiddens), jnp.float32)
    b1 = scale * jax.random.normal(ks[1], (1, num_hiddens), jnp.float32)
    w2 = scale * jax.random.normal(ks[2], (num_hiddens, num_hiddens), jnp.float32)
    b2 = scale * jax.random.normal(ks[3], (1, num_hiddens), jnp.float32)
    w3 = scale * jax.random.normal(ks[4], (num_hiddens, num_outputs), jnp.float32)
    b3 = scale * jax.random.normal(ks[5], (1, num_outputs), jnp.float32)
    return (w1, b1, w2, b2, w3, b3)


def aggregate_ref(V_A, V_B, params, precision=None):
    """Pure-JAX reference for correctness checking (dropout = identity in eval)."""
    w1, b1, w2, b2, w3, b3 = params
    x = jnp.concatenate([V_A.sum(axis=1), V_B.sum(axis=1)], axis=1)
    h1 = jnp.maximum(jnp.dot(x, w1, precision=precision) + b1, 0.0)
    h2 = jnp.maximum(jnp.dot(h1, w2, precision=precision) + b2, 0.0)
    return jnp.dot(h2, w3, precision=precision) + b3


if __name__ == "__main__":
    key = jax.random.PRNGKey(0)
    k_va, k_vb, k_p, k_va2, k_vb2 = jax.random.split(key, 5)

    # Small shapes consistent with the module: num_inputs = 2 * feat_dim.
    B, La, Lb, D = 2, 8, 8, 32
    num_inputs, num_hiddens, num_outputs = 2 * D, 32, 3
    V_A = jax.random.normal(k_va, (B, La, D), jnp.float32)
    V_B = jax.random.normal(k_vb, (B, Lb, D), jnp.float32)
    params = init_params(k_p, num_inputs, num_hiddens, num_outputs)
    prepared = prepare_params(params, D)     # one-time (hoisted) weight prep

    out = jax.block_until_ready(aggregate(V_A, V_B, prepared))
    ref = aggregate_ref(V_A, V_B, params)
    assert out.shape == (B, num_outputs)
    assert jnp.allclose(out, ref, atol=1e-4, rtol=1e-4)

    # Exercise the tiled + masked path: ragged batch (20 % 8 != 0) and ragged
    # seq tails (20 % 8, 12 % 8 != 0) with NO input padding pass in HBM.
    # (Tiny explicit tiles are for testing only; production uses the auto
    #  heuristic / min_step_bytes floor.)
    B2, La2, Lb2 = 20, 20, 12
    V_A2 = jax.random.normal(k_va2, (B2, La2, D), jnp.float32)
    V_B2 = jax.random.normal(k_vb2, (B2, Lb2, D), jnp.float32)
    out2 = jax.block_until_ready(
        aggregate(V_A2, V_B2, prepared, batch_tile=8, seq_tile_cap=8,
                  min_step_bytes=0))
    ref2 = aggregate_ref(V_A2, V_B2, params, precision="highest")
    assert out2.shape == (B2, num_outputs)
    assert jnp.allclose(out2, ref2, atol=1e-3, rtol=1e-3)

    print("KERNEL_OK")
</pallas_src>

<mosaic_0001>
module attributes {stable_mosaic.version = 11 : i64} {
  func.func @aggregate_kernel(%arg0: i32, %arg1: i32, %arg2: memref<2x8x32xf32, #tpu.memory_space<vmem>>, %arg3: memref<2x8x32xf32, #tpu.memory_space<vmem>>, %arg4: memref<32x32xf32, #tpu.memory_space<vmem>>, %arg5: memref<32x32xf32, #tpu.memory_space<vmem>>, %arg6: memref<1x32xf32, #tpu.memory_space<vmem>>, %arg7: memref<32x32xf32, #tpu.memory_space<vmem>>, %arg8: memref<1x32xf32, #tpu.memory_space<vmem>>, %arg9: memref<32x128xf32, #tpu.memory_space<vmem>>, %arg10: memref<1x128xf32, #tpu.memory_space<vmem>>, %arg11: memref<2x128xf32, #tpu.memory_space<vmem>>, %arg12: memref<2x32xf32, #tpu.memory_space<vmem>>, %arg13: memref<2x32xf32, #tpu.memory_space<vmem>>) attributes {dimension_semantics = [#tpu.dimension_semantics<parallel>, #tpu.dimension_semantics<arbitrary>], iteration_bounds = array<i64: 1, 1>, scalar_prefetch = 0 : i64, scratch_operands = 2 : i64, tpu.core_type = #tpu.core_type<tc>, window_params = [{transform_indices = @transform_0, window_bounds = array<i64: 2, 8, 32>}, {transform_indices = @transform_1, window_bounds = array<i64: 2, 8, 32>}, {pipeline_mode = #tpu.pipeline_mode<synchronous>, transform_indices = @transform_2, window_bounds = array<i64: 32, 32>}, {pipeline_mode = #tpu.pipeline_mode<synchronous>, transform_indices = @transform_3, window_bounds = array<i64: 32, 32>}, {pipeline_mode = #tpu.pipeline_mode<synchronous>, transform_indices = @transform_4, window_bounds = array<i64: 1, 32>}, {pipeline_mode = #tpu.pipeline_mode<synchronous>, transform_indices = @transform_5, window_bounds = array<i64: 32, 32>}, {pipeline_mode = #tpu.pipeline_mode<synchronous>, transform_indices = @transform_6, window_bounds = array<i64: 1, 32>}, {pipeline_mode = #tpu.pipeline_mode<synchronous>, transform_indices = @transform_7, window_bounds = array<i64: 32, 128>}, {pipeline_mode = #tpu.pipeline_mode<synchronous>, transform_indices = @transform_8, window_bounds = array<i64: 1, 128>}, {transform_indices = @transform_9, window_bounds = array<i64: 2, 128>}]} {
    %c0_i32 = arith.constant 0 : i32
    %0 = arith.cmpi eq, %arg1, %c0_i32 : i32
    %1 = arith.extui %0 : i1 to i32
    %c0_i32_0 = arith.constant 0 : i32
    %2 = arith.cmpi ne, %1, %c0_i32_0 : i32
    scf.if %2 {
      %cst_17 = arith.constant 0.000000e+00 : f32
      %16 = vector.broadcast %cst_17 : f32 to vector<2x32xf32>
      %c0_18 = arith.constant 0 : index
      %c0_19 = arith.constant 0 : index
      %17 = vector.load %arg12[%c0_18, %c0_19] : memref<2x32xf32, #tpu.memory_space<vmem>>, vector<2x32xf32>
      tpu.vector_store %arg12[%c0_18, %c0_19], %16 {strides = array<i32>} : memref<2x32xf32, #tpu.memory_space<vmem>>, vector<2x32xf32>,
      %cst_20 = arith.constant 0.000000e+00 : f32
      %18 = vector.broadcast %cst_20 : f32 to vector<2x32xf32>
      %c0_21 = arith.constant 0 : index
      %c0_22 = arith.constant 0 : index
      %19 = vector.load %arg13[%c0_21, %c0_22] : memref<2x32xf32, #tpu.memory_space<vmem>>, vector<2x32xf32>
      tpu.vector_store %arg13[%c0_21, %c0_22], %18 {strides = array<i32>} : memref<2x32xf32, #tpu.memory_space<vmem>>, vector<2x32xf32>,
    } else {
    }
    %c0 = arith.constant 0 : index
    %c0_1 = arith.constant 0 : index
    %c0_2 = arith.constant 0 : index
    %3 = vector.load %arg2[%c0, %c0_1, %c0_2] : memref<2x8x32xf32, #tpu.memory_space<vmem>>, vector<2x8x32xf32>
    %c0_3 = arith.constant 0 : index
    %c0_4 = arith.constant 0 : index
    %c0_5 = arith.constant 0 : index
    %4 = vector.load %arg3[%c0_3, %c0_4, %c0_5] : memref<2x8x32xf32, #tpu.memory_space<vmem>>, vector<2x8x32xf32>
    %c0_6 = arith.constant 0 : index
    %c0_7 = arith.constant 0 : index
    %5 = vector.load %arg12[%c0_6, %c0_7] : memref<2x32xf32, #tpu.memory_space<vmem>>, vector<2x32xf32>
    %cst = arith.constant dense<0.000000e+00> : vector<2x32xf32>
    %6 = vector.multi_reduction <add>, %3, %cst [1] : vector<2x8x32xf32> to vector<2x32xf32>
    %7 = arith.addf %5, %6 : vector<2x32xf32>
    %c0_8 = arith.constant 0 : index
    %c0_9 = arith.constant 0 : index
    %8 = vector.load %arg12[%c0_8, %c0_9] : memref<2x32xf32, #tpu.memory_space<vmem>>, vector<2x32xf32>
    tpu.vector_store %arg12[%c0_8, %c0_9], %7 {strides = array<i32>} : memref<2x32xf32, #tpu.memory_space<vmem>>, vector<2x32xf32>,
    %c0_10 = arith.constant 0 : index
    %c0_11 = arith.constant 0 : index
    %9 = vector.load %arg13[%c0_10, %c0_11] : memref<2x32xf32, #tpu.memory_space<vmem>>, vector<2x32xf32>
    %cst_12 = arith.constant dense<0.000000e+00> : vector<2x32xf32>
    %10 = vector.multi_reduction <add>, %4, %cst_12 [1] : vector<2x8x32xf32> to vector<2x32xf32>
    %11 = arith.addf %9, %10 : vector<2x32xf32>
    %c0_13 = arith.constant 0 : index
    %c0_14 = arith.constant 0 : index
    %12 = vector.load %arg13[%c0_13, %c0_14] : memref<2x32xf32, #tpu.memory_space<vmem>>, vector<2x32xf32>
    tpu.vector_store %arg13[%c0_13, %c0_14], %11 {strides = array<i32>} : memref<2x32xf32, #tpu.memory_space<vmem>>, vector<2x32xf32>,
    %c0_i32_15 = arith.constant 0 : i32
    %13 = arith.cmpi eq, %arg1, %c0_i32_15 : i32
    %14 = arith.extui %13 : i1 to i32
    %c0_i32_16 = arith.constant 0 : i32
    %15 = arith.cmpi ne, %14, %c0_i32_16 : i32
    scf.if %15 {
      %c0_17 = arith.constant 0 : index
      %c0_18 = arith.constant 0 : index
      %16 = vector.load %arg12[%c0_17, %c0_18] : memref<2x32xf32, #tpu.memory_space<vmem>>, vector<2x32xf32>
      %c0_19 = arith.constant 0 : index
      %c0_20 = arith.constant 0 : index
      %17 = vector.load %arg13[%c0_19, %c0_20] : memref<2x32xf32, #tpu.memory_space<vmem>>, vector<2x32xf32>
      %c0_21 = arith.constant 0 : index
      %c0_22 = arith.constant 0 : index
      %18 = vector.load %arg4[%c0_21, %c0_22] : memref<32x32xf32, #tpu.memory_space<vmem>>, vector<32x32xf32>
      %cst_23 = arith.constant dense<0.000000e+00> : vector<2x32xf32>
      %19 = tpu.matmul %16, %18, %cst_23 {dimension_numbers = #tpu.dot_dimension_numbers<[1], [0], [0], [1], [0, 0, 1, 1], [], []>} : vector<2x32xf32>, vector<32x32xf32>, vector<2x32xf32> -> vector<2x32xf32>
      %c0_24 = arith.constant 0 : index
      %c0_25 = arith.constant 0 : index
      %20 = vector.load %arg5[%c0_24, %c0_25] : memref<32x32xf32, #tpu.memory_space<vmem>>, vector<32x32xf32>
      %cst_26 = arith.constant dense<0.000000e+00> : vector<2x32xf32>
      %21 = tpu.matmul %17, %20, %cst_26 {dimension_numbers = #tpu.dot_dimension_numbers<[1], [0], [0], [1], [0, 0, 1, 1], [], []>} : vector<2x32xf32>, vector<32x32xf32>, vector<2x32xf32> -> vector<2x32xf32>
      %22 = arith.addf %19, %21 : vector<2x32xf32>
      %c0_27 = arith.constant 0 : index
      %c0_28 = arith.constant 0 : index
      %23 = vector.load %arg6[%c0_27, %c0_28] : memref<1x32xf32, #tpu.memory_space<vmem>>, vector<1x32xf32>
      %24 = vector.broadcast %23 : vector<1x32xf32> to vector<2x32xf32>
      %25 = arith.addf %22, %24 : vector<2x32xf32>
      %cst_29 = arith.constant 0.000000e+00 : f32
      %26 = vector.broadcast %cst_29 : f32 to vector<2x32xf32>
      %27 = arith.maximumf %25, %26 : vector<2x32xf32>
      %c0_30 = arith.constant 0 : index
      %c0_31 = arith.constant 0 : index
      %28 = vector.load %arg7[%c0_30, %c0_31] : memref<32x32xf32, #tpu.memory_space<vmem>>, vector<32x32xf32>
      %cst_32 = arith.constant dense<0.000000e+00> : vector<2x32xf32>
      %29 = tpu.matmul %27, %28, %cst_32 {dimension_numbers = #tpu.dot_dimension_numbers<[1], [0], [0], [1], [0, 0, 1, 1], [], []>} : vector<2x32xf32>, vector<32x32xf32>, vector<2x32xf32> -> vector<2x32xf32>
      %c0_33 = arith.constant 0 : index
      %c0_34 = arith.constant 0 : index
      %30 = vector.load %arg8[%c0_33, %c0_34] : memref<1x32xf32, #tpu.memory_space<vmem>>, vector<1x32xf32>
      %31 = vector.broadcast %30 : vector<1x32xf32> to vector<2x32xf32>
      %32 = arith.addf %29, %31 : vector<2x32xf32>
      %cst_35 = arith.constant 0.000000e+00 : f32
      %33 = vector.broadcast %cst_35 : f32 to vector<2x32xf32>
      %34 = arith.maximumf %32, %33 : vector<2x32xf32>
      %c0_36 = arith.constant 0 : index
      %c0_37 = arith.constant 0 : index
      %35 = vector.load %arg9[%c0_36, %c0_37] : memref<32x128xf32, #tpu.memory_space<vmem>>, vector<32x128xf32>
      %cst_38 = arith.constant dense<0.000000e+00> : vector<2x128xf32>
      %36 = tpu.matmul %34, %35, %cst_38 {dimension_numbers = #tpu.dot_dimension_numbers<[1], [0], [0], [1], [0, 0, 1, 1], [], []>} : vector<2x32xf32>, vector<32x128xf32>, vector<2x128xf32> -> vector<2x128xf32>
      %c0_39 = arith.constant 0 : index
      %c0_40 = arith.constant 0 : index
      %37 = vector.load %arg10[%c0_39, %c0_40] : memref<1x128xf32, #tpu.memory_space<vmem>>, vector<1x128xf32>
      %38 = vector.broadcast %37 : vector<1x128xf32> to vector<2x128xf32>
      %39 = arith.addf %36, %38 : vector<2x128xf32>
      %c0_41 = arith.constant 0 : index
      %c0_42 = arith.constant 0 : index
      %40 = vector.load %arg11[%c0_41, %c0_42] : memref<2x128xf32, #tpu.memory_space<vmem>>, vector<2x128xf32>
      tpu.vector_store %arg11[%c0_41, %c0_42], %39 {strides = array<i32>} : memref<2x128xf32, #tpu.memory_space<vmem>>, vector<2x128xf32>,
    } else {
    }
    return
  }
  func.func @transform_0(%arg0: i32, %arg1: i32) -> (i32, i32, i32) {
    %c0_i32 = arith.constant 0 : i32
    %c0_i32_0 = arith.constant 0 : i32
    return %arg0, %arg1, %c0_i32 : i32, i32, i32
  }
  func.func @transform_1(%arg0: i32, %arg1: i32) -> (i32, i32, i32) {
    %c0_i32 = arith.constant 0 : i32
    %c0_i32_0 = arith.constant 0 : i32
    return %arg0, %arg1, %c0_i32 : i32, i32, i32
  }
  func.func @transform_2(%arg0: i32, %arg1: i32) -> (i32, i32) {
    %c0_i32 = arith.constant 0 : i32
    %c0_i32_0 = arith.constant 0 : i32
    %c0_i32_1 = arith.constant 0 : i32
    return %c0_i32, %c0_i32_0 : i32, i32
  }
  func.func @transform_3(%arg0: i32, %arg1: i32) -> (i32, i32) {
    %c0_i32 = arith.constant 0 : i32
    %c0_i32_0 = arith.constant 0 : i32
    %c0_i32_1 = arith.constant 0 : i32
    return %c0_i32, %c0_i32_0 : i32, i32
  }
  func.func @transform_4(%arg0: i32, %arg1: i32) -> (i32, i32) {
    %c0_i32 = arith.constant 0 : i32
    %c0_i32_0 = arith.constant 0 : i32
    %c0_i32_1 = arith.constant 0 : i32
    return %c0_i32, %c0_i32_0 : i32, i32
  }
  func.func @transform_5(%arg0: i32, %arg1: i32) -> (i32, i32) {
    %c0_i32 = arith.constant 0 : i32
    %c0_i32_0 = arith.constant 0 : i32
    %c0_i32_1 = arith.constant 0 : i32
    return %c0_i32, %c0_i32_0 : i32, i32
  }
  func.func @transform_6(%arg0: i32, %arg1: i32) -> (i32, i32) {
    %c0_i32 = arith.constant 0 : i32
    %c0_i32_0 = arith.constant 0 : i32
    %c0_i32_1 = arith.constant 0 : i32
    return %c0_i32, %c0_i32_0 : i32, i32
  }
  func.func @transform_7(%arg0: i32, %arg1: i32) -> (i32, i32) {
    %c0_i32 = arith.constant 0 : i32
    %c0_i32_0 = arith.constant 0 : i32
    %c0_i32_1 = arith.constant 0 : i32
    return %c0_i32, %c0_i32_0 : i32, i32
  }
  func.func @transform_8(%arg0: i32, %arg1: i32) -> (i32, i32) {
    %c0_i32 = arith.constant 0 : i32
    %c0_i32_0 = arith.constant 0 : i32
    %c0_i32_1 = arith.constant 0 : i32
    return %c0_i32, %c0_i32_0 : i32, i32
  }
  func.func @transform_9(%arg0: i32, %arg1: i32) -> (i32, i32) {
    %c0_i32 = arith.constant 0 : i32
    %c0_i32_0 = arith.constant 0 : i32
    return %arg0, %c0_i32 : i32, i32
  }
}

module attributes {stable_mosaic.version = 11 : i64} {
  func.func @aggregate_kernel(%arg0: i32, %arg1: i32, %arg2: memref<2x8x32xf32, #tpu.memory_space<vmem>>, %arg3: memref<2x8x32xf32, #tpu.memory_space<vmem>>, %arg4: memref<32x32xf32, #tpu.memory_space<vmem>>, %arg5: memref<32x32xf32, #tpu.memory_space<vmem>>, %arg6: memref<1x32xf32, #tpu.memory_space<vmem>>, %arg7: memref<32x32xf32, #tpu.memory_space<vmem>>, %arg8: memref<1x32xf32, #tpu.memory_space<vmem>>, %arg9: memref<32x128xf32, #tpu.memory_space<vmem>>, %arg10: memref<1x128xf32, #tpu.memory_space<vmem>>, %arg11: memref<2x128xf32, #tpu.memory_space<vmem>>, %arg12: memref<2x32xf32, #tpu.memory_space<vmem>>, %arg13: memref<2x32xf32, #tpu.memory_space<vmem>>) attributes {dimension_semantics = [#tpu.dimension_semantics<parallel>, #tpu.dimension_semantics<arbitrary>], iteration_bounds = array<i64: 1, 1>, scalar_prefetch = 0 : i64, scratch_operands = 2 : i64, tpu.core_type = #tpu.core_type<tc>, window_params = [{transform_indices = @transform_0, window_bounds = array<i64: 2, 8, 32>}, {transform_indices = @transform_1, window_bounds = array<i64: 2, 8, 32>}, {pipeline_mode = #tpu.pipeline_mode<synchronous>, transform_indices = @transform_2, window_bounds = array<i64: 32, 32>}, {pipeline_mode = #tpu.pipeline_mode<synchronous>, transform_indices = @transform_3, window_bounds = array<i64: 32, 32>}, {pipeline_mode = #tpu.pipeline_mode<synchronous>, transform_indices = @transform_4, window_bounds = array<i64: 1, 32>}, {pipeline_mode = #tpu.pipeline_mode<synchronous>, transform_indices = @transform_5, window_bounds = array<i64: 32, 32>}, {pipeline_mode = #tpu.pipeline_mode<synchronous>, transform_indices = @transform_6, window_bounds = array<i64: 1, 32>}, {pipeline_mode = #tpu.pipeline_mode<synchronous>, transform_indices = @transform_7, window_bounds = array<i64: 32, 128>}, {pipeline_mode = #tpu.pipeline_mode<synchronous>, transform_indices = @transform_8, window_bounds = array<i64: 1, 128>}, {transform_indices = @transform_9, window_bounds = array<i64: 2, 128>}]} {
    %c0_i32 = arith.constant 0 : i32
    %0 = arith.cmpi eq, %arg1, %c0_i32 : i32
    %1 = arith.extui %0 : i1 to i32
    %c0_i32_0 = arith.constant 0 : i32
    %2 = arith.cmpi ne, %1, %c0_i32_0 : i32
    scf.if %2 {
      %cst_17 = arith.constant 0.000000e+00 : f32
      %16 = vector.broadcast %cst_17 : f32 to vector<2x32xf32>
      %c0_18 = arith.constant 0 : index
      %c0_19 = arith.constant 0 : index
      %17 = vector.load %arg12[%c0_18, %c0_19] : memref<2x32xf32, #tpu.memory_space<vmem>>, vector<2x32xf32>
      tpu.vector_store %arg12[%c0_18, %c0_19], %16 {strides = array<i32>} : memref<2x32xf32, #tpu.memory_space<vmem>>, vector<2x32xf32>,
      %cst_20 = arith.constant 0.000000e+00 : f32
      %18 = vector.broadcast %cst_20 : f32 to vector<2x32xf32>
      %c0_21 = arith.constant 0 : index
      %c0_22 = arith.constant 0 : index
      %19 = vector.load %arg13[%c0_21, %c0_22] : memref<2x32xf32, #tpu.memory_space<vmem>>, vector<2x32xf32>
      tpu.vector_store %arg13[%c0_21, %c0_22], %18 {strides = array<i32>} : memref<2x32xf32, #tpu.memory_space<vmem>>, vector<2x32xf32>,
    } else {
    }
    %c0 = arith.constant 0 : index
    %c0_1 = arith.constant 0 : index
    %c0_2 = arith.constant 0 : index
    %3 = vector.load %arg2[%c0, %c0_1, %c0_2] : memref<2x8x32xf32, #tpu.memory_space<vmem>>, vector<2x8x32xf32>
    %c0_3 = arith.constant 0 : index
    %c0_4 = arith.constant 0 : index
    %c0_5 = arith.constant 0 : index
    %4 = vector.load %arg3[%c0_3, %c0_4, %c0_5] : memref<2x8x32xf32, #tpu.memory_space<vmem>>, vector<2x8x32xf32>
    %c0_6 = arith.constant 0 : index
    %c0_7 = arith.constant 0 : index
    %5 = vector.load %arg12[%c0_6, %c0_7] : memref<2x32xf32, #tpu.memory_space<vmem>>, vector<2x32xf32>
    %cst = arith.constant dense<0.000000e+00> : vector<2x32xf32>
    %6 = vector.multi_reduction <add>, %3, %cst [1] : vector<2x8x32xf32> to vector<2x32xf32>
    %7 = arith.addf %5, %6 : vector<2x32xf32>
    %c0_8 = arith.constant 0 : index
    %c0_9 = arith.constant 0 : index
    %8 = vector.load %arg12[%c0_8, %c0_9] : memref<2x32xf32, #tpu.memory_space<vmem>>, vector<2x32xf32>
    tpu.vector_store %arg12[%c0_8, %c0_9], %7 {strides = array<i32>} : memref<2x32xf32, #tpu.memory_space<vmem>>, vector<2x32xf32>,
    %c0_10 = arith.constant 0 : index
    %c0_11 = arith.constant 0 : index
    %9 = vector.load %arg13[%c0_10, %c0_11] : memref<2x32xf32, #tpu.memory_space<vmem>>, vector<2x32xf32>
    %cst_12 = arith.constant dense<0.000000e+00> : vector<2x32xf32>
    %10 = vector.multi_reduction <add>, %4, %cst_12 [1] : vector<2x8x32xf32> to vector<2x32xf32>
    %11 = arith.addf %9, %10 : vector<2x32xf32>
    %c0_13 = arith.constant 0 : index
    %c0_14 = arith.constant 0 : index
    %12 = vector.load %arg13[%c0_13, %c0_14] : memref<2x32xf32, #tpu.memory_space<vmem>>, vector<2x32xf32>
    tpu.vector_store %arg13[%c0_13, %c0_14], %11 {strides = array<i32>} : memref<2x32xf32, #tpu.memory_space<vmem>>, vector<2x32xf32>,
    %c0_i32_15 = arith.constant 0 : i32
    %13 = arith.cmpi eq, %arg1, %c0_i32_15 : i32
    %14 = arith.extui %13 : i1 to i32
    %c0_i32_16 = arith.constant 0 : i32
    %15 = arith.cmpi ne, %14, %c0_i32_16 : i32
    scf.if %15 {
      %c0_17 = arith.constant 0 : index
      %c0_18 = arith.constant 0 : index
      %16 = vector.load %arg12[%c0_17, %c0_18] : memref<2x32xf32, #tpu.memory_space<vmem>>, vector<2x32xf32>
      %c0_19 = arith.constant 0 : index
      %c0_20 = arith.constant 0 : index
      %17 = vector.load %arg13[%c0_19, %c0_20] : memref<2x32xf32, #tpu.memory_space<vmem>>, vector<2x32xf32>
      %c0_21 = arith.constant 0 : index
      %c0_22 = arith.constant 0 : index
      %18 = vector.load %arg4[%c0_21, %c0_22] : memref<32x32xf32, #tpu.memory_space<vmem>>, vector<32x32xf32>
      %cst_23 = arith.constant dense<0.000000e+00> : vector<2x32xf32>
      %19 = tpu.matmul %16, %18, %cst_23 {dimension_numbers = #tpu.dot_dimension_numbers<[1], [0], [0], [1], [0, 0, 1, 1], [], []>} : vector<2x32xf32>, vector<32x32xf32>, vector<2x32xf32> -> vector<2x32xf32>
      %c0_24 = arith.constant 0 : index
      %c0_25 = arith.constant 0 : index
      %20 = vector.load %arg5[%c0_24, %c0_25] : memref<32x32xf32, #tpu.memory_space<vmem>>, vector<32x32xf32>
      %cst_26 = arith.constant dense<0.000000e+00> : vector<2x32xf32>
      %21 = tpu.matmul %17, %20, %cst_26 {dimension_numbers = #tpu.dot_dimension_numbers<[1], [0], [0], [1], [0, 0, 1, 1], [], []>} : vector<2x32xf32>, vector<32x32xf32>, vector<2x32xf32> -> vector<2x32xf32>
      %22 = arith.addf %19, %21 : vector<2x32xf32>
      %c0_27 = arith.constant 0 : index
      %c0_28 = arith.constant 0 : index
      %23 = vector.load %arg6[%c0_27, %c0_28] : memref<1x32xf32, #tpu.memory_space<vmem>>, vector<1x32xf32>
      %24 = vector.broadcast %23 : vector<1x32xf32> to vector<2x32xf32>
      %25 = arith.addf %22, %24 : vector<2x32xf32>
      %cst_29 = arith.constant 0.000000e+00 : f32
      %26 = vector.broadcast %cst_29 : f32 to vector<2x32xf32>
      %27 = arith.maximumf %25, %26 : vector<2x32xf32>
      %c0_30 = arith.constant 0 : index
      %c0_31 = arith.constant 0 : index
      %28 = vector.load %arg7[%c0_30, %c0_31] : memref<32x32xf32, #tpu.memory_space<vmem>>, vector<32x32xf32>
      %cst_32 = arith.constant dense<0.000000e+00> : vector<2x32xf32>
      %29 = tpu.matmul %27, %28, %cst_32 {dimension_numbers = #tpu.dot_dimension_numbers<[1], [0], [0], [1], [0, 0, 1, 1], [], []>} : vector<2x32xf32>, vector<32x32xf32>, vector<2x32xf32> -> vector<2x32xf32>
      %c0_33 = arith.constant 0 : index
      %c0_34 = arith.constant 0 : index
      %30 = vector.load %arg8[%c0_33, %c0_34] : memref<1x32xf32, #tpu.memory_space<vmem>>, vector<1x32xf32>
      %31 = vector.broadcast %30 : vector<1x32xf32> to vector<2x32xf32>
      %32 = arith.addf %29, %31 : vector<2x32xf32>
      %cst_35 = arith.constant 0.000000e+00 : f32
      %33 = vector.broadcast %cst_35 : f32 to vector<2x32xf32>
      %34 = arith.maximumf %32, %33 : vector<2x32xf32>
      %c0_36 = arith.constant 0 : index
      %c0_37 = arith.constant 0 : index
      %35 = vector.load %arg9[%c0_36, %c0_37] : memref<32x128xf32, #tpu.memory_space<vmem>>, vector<32x128xf32>
      %cst_38 = arith.constant dense<0.000000e+00> : vector<2x128xf32>
      %36 = tpu.matmul %34, %35, %cst_38 {dimension_numbers = #tpu.dot_dimension_numbers<[1], [0], [0], [1], [0, 0, 1, 1], [], []>} : vector<2x32xf32>, vector<32x128xf32>, vector<2x128xf32> -> vector<2x128xf32>
      %c0_39 = arith.constant 0 : index
      %c0_40 = arith.constant 0 : index
      %37 = vector.load %arg10[%c0_39, %c0_40] : memref<1x128xf32, #tpu.memory_space<vmem>>, vector<1x128xf32>
      %38 = vector.broadcast %37 : vector<1x128xf32> to vector<2x128xf32>
      %39 = arith.addf %36, %38 : vector<2x128xf32>
      %c0_41 = arith.constant 0 : index
      %c0_42 = arith.constant 0 : index
      %40 = vector.load %arg11[%c0_41, %c0_42] : memref<2x128xf32, #tpu.memory_space<vmem>>, vector<2x128xf32>
      tpu.vector_store %arg11[%c0_41, %c0_42], %39 {strides = array<i32>} : memref<2x128xf32, #tpu.memory_space<vmem>>, vector<2x128xf32>,
    } else {
    }
    return
  }
  func.func @transform_0(%arg0: i32, %arg1: i32) -> (i32, i32, i32) {
    %c0_i32 = arith.constant 0 : i32
    %c0_i32_0 = arith.constant 0 : i32
    return %arg0, %arg1, %c0_i32 : i32, i32, i32
  }
  func.func @transform_1(%arg0: i32, %arg1: i32) -> (i32, i32, i32) {
    %c0_i32 = arith.constant 0 : i32
    %c0_i32_0 = arith.constant 0 : i32
    return %arg0, %arg1, %c0_i32 : i32, i32, i32
  }
  func.func @transform_2(%arg0: i32, %arg1: i32) -> (i32, i32) {
    %c0_i32 = arith.constant 0 : i32
    %c0_i32_0 = arith.constant 0 : i32
    %c0_i32_1 = arith.constant 0 : i32
    return %c0_i32, %c0_i32_0 : i32, i32
  }
  func.func @transform_3(%arg0: i32, %arg1: i32) -> (i32, i32) {
    %c0_i32 = arith.constant 0 : i32
    %c0_i32_0 = arith.constant 0 : i32
    %c0_i32_1 = arith.constant 0 : i32
    return %c0_i32, %c0_i32_0 : i32, i32
  }
  func.func @transform_4(%arg0: i32, %arg1: i32) -> (i32, i32) {
    %c0_i32 = arith.constant 0 : i32
    %c0_i32_0 = arith.constant 0 : i32
    %c0_i32_1 = arith.constant 0 : i32
    return %c0_i32, %c0_i32_0 : i32, i32
  }
  func.func @transform_5(%arg0: i32, %arg1: i32) -> (i32, i32) {
    %c0_i32 = arith.constant 0 : i32
    %c0_i32_0 = arith.constant 0 : i32
    %c0_i32_1 = arith.constant 0 : i32
    return %c0_i32, %c0_i32_0 : i32, i32
  }
  func.func @transform_6(%arg0: i32, %arg1: i32) -> (i32, i32) {
    %c0_i32 = arith.constant 0 : i32
    %c0_i32_0 = arith.constant 0 : i32
    %c0_i32_1 = arith.constant 0 : i32
    return %c0_i32, %c0_i32_0 : i32, i32
  }
  func.func @transform_7(%arg0: i32, %arg1: i32) -> (i32, i32) {
    %c0_i32 = arith.constant 0 : i32
    %c0_i32_0 = arith.constant 0 : i32
    %c0_i32_1 = arith.constant 0 : i32
    return %c0_i32, %c0_i32_0 : i32, i32
  }
  func.func @transform_8(%arg0: i32, %arg1: i32) -> (i32, i32) {
    %c0_i32 = arith.constant 0 : i32
    %c0_i32_0 = arith.constant 0 : i32
    %c0_i32_1 = arith.constant 0 : i32
    return %c0_i32, %c0_i32_0 : i32, i32
  }
  func.func @transform_9(%arg0: i32, %arg1: i32) -> (i32, i32) {
    %c0_i32 = arith.constant 0 : i32
    %c0_i32_0 = arith.constant 0 : i32
    return %arg0, %c0_i32 : i32, i32
  }
}

</mosaic_0001>

<llo_original>
// kernel: tpu_custom_call.1
$region0: #{tpu_custom_call.1}
  #allocation0 [shape = 'u32[]', space=smem, size = 0x4, offset = 0x4, fixed_abs, tag = 'smem constant byte address 0x4 - core index']
  #allocation1 [shape = 'u32[72,128]{1,0:T(1,128)}', space=vmem, size = 0x9000, scoped, tag = 'internal scratch']
  #allocation2 [shape = 'f32[2,32]{1,0:T(2,128)}', space=vmem, size = 0x400, scoped, tag = 'scratch operand']
  #allocation3 [shape = 'f32[2,32]{1,0:T(2,128)}', space=vmem, size = 0x400, scoped, tag = 'scratch operand']
  %s0 = inlined_call_operand.hbm [shape: f32[2,8,32], index: 0, kind: input, shape index: {}]
  %s1 = inlined_call_operand.hbm [shape: f32[2,8,32], index: 1, kind: input, shape index: {}]
  %s2 = inlined_call_operand.hbm [shape: f32[32,32], index: 2, kind: input, shape index: {}]
  %s3 = inlined_call_operand.hbm [shape: f32[32,32], index: 3, kind: input, shape index: {}]
  %s4 = inlined_call_operand.vmem [shape: f32[1,32], index: 4, kind: input, shape index: {}]
  %s5 = inlined_call_operand.hbm [shape: f32[32,32], index: 5, kind: input, shape index: {}]
  %s6 = inlined_call_operand.vmem [shape: f32[1,32], index: 6, kind: input, shape index: {}]
  %s7 = inlined_call_operand.hbm [shape: f32[32,128], index: 7, kind: input, shape index: {}]
  %s8 = inlined_call_operand.vmem [shape: f32[1,128], index: 8, kind: input, shape index: {}]
  %s9 = inlined_call_operand.hbm [shape: f32[2,128], index: 9, kind: output, shape index: {}]
  %s10 = sld [smem:[#allocation0]]
  $region78: #{tpu_custom_call.1} parent=0
    _
  %s12 = ssub.s32 1, %s10
  %s13 = scalar_select 0, %s12, %s10
  $region1: #{tpu_custom_call.1} parent=0
    #allocation4 [shape = 'u8[8192]{0}', space=vmem, size = 0x2000, scoped, tag = 'input window, operand 0, single buffered']
    #allocation5 [shape = 's32[1]{0}', space=sflag, size = 0x4, scoped, tag = 'scoped memory for tpu_custom_call.1']
    #allocation6 [shape = 's32[1]{0}', space=sflag, size = 0x4, scoped, tag = 'scoped memory for tpu_custom_call.1']
    #allocation7 [shape = 'u8[8192]{0}', space=vmem, size = 0x2000, scoped, tag = 'input window, operand 1, single buffered']
    #allocation8 [shape = 's32[1]{0}', space=sflag, size = 0x4, scoped, tag = 'scoped memory for tpu_custom_call.1']
    #allocation9 [shape = 'u8[16384]{0}', space=vmem, size = 0x4000, scoped, tag = 'input window, operand 2, single buffered']
    #allocation10 [shape = 'u8[16384]{0}', space=vmem, size = 0x4000, scoped, tag = 'input window, operand 3, single buffered']
    #allocation11 [shape = 's32[1]{0}', space=sflag, size = 0x4, scoped, tag = 'scoped memory for tpu_custom_call.1']
    #allocation12 [shape = 'u8[16384]{0}', space=vmem, size = 0x4000, scoped, tag = 'input window, operand 5, single buffered']
    #allocation13 [shape = 'u8[16384]{0}', space=vmem, size = 0x4000, scoped, tag = 'input window, operand 7, single buffered']
    #allocation14 [shape = 's32[1]{0}', space=sflag, size = 0x4, scoped, tag = 'scoped memory for tpu_custom_call.1']
    #allocation15 [shape = 'u8[1024]{0}', space=vmem, size = 0x400, scoped, tag = 'output window, operand 0, single buffered']
    %14 = vsyncpa [#allocation5], 0
    %15 = vsyncpa [#allocation8], 0
    %16 = vsyncpa [#allocation11], 0
    %17 = vsyncpa [#allocation14], 0
    %18 = vsyncpa [#allocation6], 0
    // Predicated region
    $region2: #{tpu_custom_call.1} parent=1 // pred_check
      _
    $region3: #{tpu_custom_call.1} parent=1 // pred_check_branch
      %20 = sbr.rel (0) target = $region5
    $region4: #{tpu_custom_call.1} parent=1 // pred_region
      %22 = vsyncadd [#allocation5], 0
      %s23 = sshll.u32 %s0, 4
      %s24 = int_to_ptr.hbm [resolvable:$true] %s23
      %s25 = sshll.u32 [#allocation4], 4
      %s26 = int_to_ptr.vmem [resolvable:$true] %s25
      %31 = dma.hbm_to_vmem [thread:$0]  %s24, 256, %s26, [#allocation5], 128, 128, 8
    $region5: #{tpu_custom_call.1} parent=1 // pred_fallthru
      _
    // Predicated region
    $region6: #{tpu_custom_call.1} parent=1 // pred_check
      _
    $region7: #{tpu_custom_call.1} parent=1 // pred_check_branch
      %33 = sbr.rel (0) target = $region9
    $region8: #{tpu_custom_call.1} parent=1 // pred_region
      %35 = vsyncadd [#allocation8], 0
      %s36 = sshll.u32 %s1, 4
      %s37 = int_to_ptr.hbm [resolvable:$true] %s36
      %s38 = sshll.u32 [#allocation7], 4
      %s39 = int_to_ptr.vmem [resolvable:$true] %s38
      %44 = dma.hbm_to_vmem [thread:$0]  %s37, 256, %s39, [#allocation8], 128, 128, 8
    $region9: #{tpu_custom_call.1} parent=1 // pred_fallthru
      _
    // Predicated region
    $region10: #{tpu_custom_call.1} parent=1 // pred_check
      _
    $region11: #{tpu_custom_call.1} parent=1 // pred_check_branch
      %46 = sbr.rel (0) target = $region13
    $region12: #{tpu_custom_call.1} parent=1 // pred_region
      %48 = vsyncadd [#allocation8], 0
      %s49 = sshll.u32 %s2, 4
      %s50 = int_to_ptr.hbm [resolvable:$true] %s49
      %s51 = sshll.u32 [#allocation9], 4
      %s52 = int_to_ptr.vmem [resolvable:$true] %s51
      %57 = dma.hbm_to_vmem [thread:$0]  %s50, 512, %s52, [#allocation8], 128, 128, 8
    $region13: #{tpu_custom_call.1} parent=1 // pred_fallthru
      _
    // Predicated region
    $region14: #{tpu_custom_call.1} parent=1 // pred_check
      _
    $region15: #{tpu_custom_call.1} parent=1 // pred_check_branch
      %59 = sbr.rel (0) target = $region17
    $region16: #{tpu_custom_call.1} parent=1 // pred_region
      %61 = vsyncadd [#allocation11], 0
      %s62 = sshll.u32 %s3, 4
      %s63 = int_to_ptr.hbm [resolvable:$true] %s62
      %s64 = sshll.u32 [#allocation10], 4
      %s65 = int_to_ptr.vmem [resolvable:$true] %s64
      %70 = dma.hbm_to_vmem [thread:$0]  %s63, 512, %s65, [#allocation11], 128, 128, 8
    $region17: #{tpu_custom_call.1} parent=1 // pred_fallthru
      _
    // Predicated region
    $region18: #{tpu_custom_call.1} parent=1 // pred_check
      _
    $region19: #{tpu_custom_call.1} parent=1 // pred_check_branch
      %72 = sbr.rel (0) target = $region21
    $region20: #{tpu_custom_call.1} parent=1 // pred_region
      _
    $region21: #{tpu_custom_call.1} parent=1 // pred_fallthru
      _
    // Predicated region
    $region22: #{tpu_custom_call.1} parent=1 // pred_check
      _
    $region23: #{tpu_custom_call.1} parent=1 // pred_check_branch
      %74 = sbr.rel (0) target = $region25
    $region24: #{tpu_custom_call.1} parent=1 // pred_region
      %76 = vsyncadd [#allocation11], 0
      %s77 = sshll.u32 %s5, 4
      %s78 = int_to_ptr.hbm [resolvable:$true] %s77
      %s79 = sshll.u32 [#allocation12], 4
      %s80 = int_to_ptr.vmem [resolvable:$true] %s79
      %85 = dma.hbm_to_vmem [thread:$0]  %s78, 512, %s80, [#allocation11], 128, 128, 8
    $region25: #{tpu_custom_call.1} parent=1 // pred_fallthru
      _
    // Predicated region
    $region26: #{tpu_custom_call.1} parent=1 // pred_check
      _
    $region27: #{tpu_custom_call.1} parent=1 // pred_check_branch
      %87 = sbr.rel (0) target = $region29
    $region28: #{tpu_custom_call.1} parent=1 // pred_region
      _
    $region29: #{tpu_custom_call.1} parent=1 // pred_fallthru
      _
    // Predicated region
    $region30: #{tpu_custom_call.1} parent=1 // pred_check
      _
    $region31: #{tpu_custom_call.1} parent=1 // pred_check_branch
      %89 = sbr.rel (0) target = $region33
    $region32: #{tpu_custom_call.1} parent=1 // pred_region
      %91 = vsyncadd [#allocation14], 0
      %s92 = sshll.u32 %s7, 4
      %s93 = int_to_ptr.hbm [resolvable:$true] %s92
      %s94 = sshll.u32 [#allocation13], 4
      %s95 = int_to_ptr.vmem [resolvable:$true] %s94
      %100 = dma.hbm_to_vmem [thread:$0]  %s93, 512, %s95, [#allocation14], 128, 128, 8
    $region33: #{tpu_custom_call.1} parent=1 // pred_fallthru
      _
    // Predicated region
    $region34: #{tpu_custom_call.1} parent=1 // pred_check
      _
    $region35: #{tpu_custom_call.1} parent=1 // pred_check_branch
      %102 = sbr.rel (0) target = $region37
    $region36: #{tpu_custom_call.1} parent=1 // pred_region
      _
    $region37: #{tpu_custom_call.1} parent=1 // pred_fallthru
      _
    // Predicated region
    $region38: #{tpu_custom_call.1} parent=1 // pred_check
      _
    $region39: #{tpu_custom_call.1} parent=1 // pred_check_branch
      %104 = sbr.rel (0) target = $region41
    $region40: #{tpu_custom_call.1} parent=1 // pred_region
      %106 = dma.done [#allocation5], 256
    $region41: #{tpu_custom_call.1} parent=1 // pred_fallthru
      _
    // Predicated region
    $region42: #{tpu_custom_call.1} parent=1 // pred_check
      _
    $region43: #{tpu_custom_call.1} parent=1 // pred_check_branch
      %108 = sbr.rel (0) target = $region45
    $region44: #{tpu_custom_call.1} parent=1 // pred_region
      %110 = dma.done [#allocation8], 256
    $region45: #{tpu_custom_call.1} parent=1 // pred_fallthru
      _
    // Predicated region
    $region46: #{tpu_custom_call.1} parent=1 // pred_check
      _
    $region47: #{tpu_custom_call.1} parent=1 // pred_check_branch
      %112 = sbr.rel (0) target = $region49
    $region48: #{tpu_custom_call.1} parent=1 // pred_region
      %114 = dma.done [#allocation8], 512
    $region49: #{tpu_custom_call.1} parent=1 // pred_fallthru
      _
    // Predicated region
    $region50: #{tpu_custom_call.1} parent=1 // pred_check
      _
    $region51: #{tpu_custom_call.1} parent=1 // pred_check_branch
      %116 = sbr.rel (0) target = $region53
    $region52: #{tpu_custom_call.1} parent=1 // pred_region
      %118 = dma.done [#allocation11], 512
    $region53: #{tpu_custom_call.1} parent=1 // pred_fallthru
      _
    // Predicated region
    $region54: #{tpu_custom_call.1} parent=1 // pred_check
      _
    $region55: #{tpu_custom_call.1} parent=1 // pred_check_branch
      %120 = sbr.rel (0) target = $region57
    $region56: #{tpu_custom_call.1} parent=1 // pred_region
      %122 = dma.done [#allocation11], 512
    $region57: #{tpu_custom_call.1} parent=1 // pred_fallthru
      _
    // Predicated region
    $region58: #{tpu_custom_call.1} parent=1 // pred_check
      _
    $region59: #{tpu_custom_call.1} parent=1 // pred_check_branch
      %124 = sbr.rel (0) target = $region61
    $region60: #{tpu_custom_call.1} parent=1 // pred_region
      %126 = dma.done [#allocation14], 512
    $region61: #{tpu_custom_call.1} parent=1 // pred_fallthru
      _
    %p127 = scmp.eq.s32.totalorder 0, 0
    // Predicated region
    $region62: #{tpu_custom_call.1} parent=1 // pred_check
      %p128 = pneg %p127
    $region63: #{tpu_custom_call.1} parent=1 // pred_check_branch
      %130 = sbr.rel (%p128) target = $region65
    $region64: #{tpu_custom_call.1} parent=1 // pred_region
      %vm131 = vcmask 254976
      %132 = vst.msk [vmem:[#allocation2] sm:$0x3] %vm131, 0.0
      %133 = vst.msk [vmem:[#allocation3] sm:$0x3] %vm131, 0.0
    $region65: #{tpu_custom_call.1} parent=1 // pred_fallthru
      _
    %v134 = vld [vmem:[#allocation4] sm:$0xff]
    %v135 = vld [vmem:[#allocation4 + $0x8] sm:$0xff]
    %v136 = vld [vmem:[#allocation7] sm:$0xff]
    %v137 = vld [vmem:[#allocation7 + $0x8] sm:$0xff]
    %v138 = vld [vmem:[#allocation2] sm:$0x3]
    %vm139 = vcmask 261120
    %v140 = vsel %vm139, %v134, 0.0
    %v141 = vrot.slane %v140, 4
    %v142 = vadd.f32 %v140, %v141
    %v143 = vrot.slane %v142, 2
    %v144 = vadd.f32 %v142, %v143
    %v145 = vrot.slane %v144, 1
    %v146 = vadd.f32 %v144, %v145
    %v147 = vsel %vm139, %v135, 0.0
    %v148 = vrot.slane %v147, 4
    %v149 = vadd.f32 %v147, %v148
    %v150 = vrot.slane %v149, 2
    %v151 = vadd.f32 %v149, %v150
    %v152 = vrot.slane %v151, 1
    %v153 = vadd.f32 %v151, %v152
    %vm156 = vcmask 1041409
    %v157 = vsel %vm156, %v153, %v146
    %v159 = vadd.f32 %v138, %v157
    %vm160 = vcmask 254976
    %161 = vst.msk [vmem:[#allocation2] sm:$0x3] %vm160, %v159
    %v162 = vld [vmem:[#allocation3] sm:$0x3]
    %v163 = vsel %vm139, %v136, 0.0
    %v164 = vrot.slane %v163, 4
    %v165 = vadd.f32 %v163, %v164
    %v166 = vrot.slane %v165, 2
    %v167 = vadd.f32 %v165, %v166
    %v168 = vrot.slane %v167, 1
    %v169 = vadd.f32 %v167, %v168
    %v170 = vsel %vm139, %v137, 0.0
    %v171 = vrot.slane %v170, 4
    %v172 = vadd.f32 %v170, %v171
    %v173 = vrot.slane %v172, 2
    %v174 = vadd.f32 %v172, %v173
    %v175 = vrot.slane %v174, 1
    %v176 = vadd.f32 %v174, %v175
    %v179 = vsel %vm156, %v176, %v169
    %v181 = vadd.f32 %v162, %v179
    %182 = vst.msk [vmem:[#allocation3] sm:$0x3] %vm160, %v181
    // Predicated region
    $region66: #{tpu_custom_call.1} parent=1 // pred_check
      %p183 = pneg %p127
    $region67: #{tpu_custom_call.1} parent=1 // pred_check_branch
      %185 = sbr.rel (%p183) target = $region69
    $region68: #{tpu_custom_call.1} parent=1 // pred_region
      %v186 = vld [vmem:[#allocation2] sm:$0x3]
      %v187 = vld [vmem:[#allocation3] sm:$0x3]
      %v188 = vld [vmem:[#allocation9] sm:$0xff]
      %v189 = vld [vmem:[#allocation9 + $0x8] sm:$0xff]
      %v190 = vld [vmem:[#allocation9 + $0x10] sm:$0xff]
      %v191 = vld [vmem:[#allocation9 + $0x18] sm:$0xff]
      %v192 = vld [vmem:[#allocation10] sm:$0xff]
      %v193 = vld [vmem:[#allocation10 + $0x8] sm:$0xff]
      %v194 = vld [vmem:[#allocation10 + $0x10] sm:$0xff]
      %v195 = vld [vmem:[#allocation10 + $0x18] sm:$0xff]
      %v197 = vsel %vm139, %v187, 0
      %199 = vmatpush.msra.mxu0 0.0
      %200 = vmatpush.msra.mxu0 0.0
      %201 = vmatpush.msra.mxu0 0.0
      %202 = vmatpush.msra.mxu0 0.0
      %203 = vmatpush.msra.mxu0 0.0
      %204 = vmatpush.msra.mxu0 0.0
      %205 = vmatpush.msra.mxu0 0.0
      %206 = vmatpush.msra.mxu0 0.0
      %207 = vmatpush.msra.mxu0 0.0
      %208 = vmatpush.msra.mxu0 0.0
      %209 = vmatpush.msra.mxu0 0.0
      %210 = vmatpush.msra.mxu0 0.0
      %211 = vmatpush.msra.mxu0 %v195
      %212 = vmatpush.msra.mxu0 %v194
      %213 = vmatpush.msra.mxu0 %v193
      %214 = vmatpush.msra.mxu0 %v192
      %215 = vmatmul.f32.gmra.mxu0 %v197
      %v216 = vpop.f32.mrf.mxu0
      %v217 = vadd.f32 0.0, %v216
      %218 = vdwg.mxu0
      %v220 = vsel %vm139, %v186, 0
      %222 = vmatpush.msra.mxu0 0.0
      %223 = vmatpush.msra.mxu0 0.0
      %224 = vmatpush.msra.mxu0 0.0
      %225 = vmatpush.msra.mxu0 0.0
      %226 = vmatpush.msra.mxu0 0.0
      %227 = vmatpush.msra.mxu0 0.0
      %228 = vmatpush.msra.mxu0 0.0
      %229 = vmatpush.msra.mxu0 0.0
      %230 = vmatpush.msra.mxu0 0.0
      %231 = vmatpush.msra.mxu0 0.0
      %232 = vmatpush.msra.mxu0 0.0
      %233 = vmatpush.msra.mxu0 0.0
      %234 = vmatpush.msra.mxu0 %v191
      %235 = vmatpush.msra.mxu0 %v190
      %236 = vmatpush.msra.mxu0 %v189
      %237 = vmatpush.msra.mxu0 %v188
      %238 = vmatmul.f32.gmra.mxu0 %v220
      %v239 = vpop.f32.mrf.mxu0
      %v240 = vadd.f32 %v217, %v239
      %241 = vdwg.mxu0
      %v242 = vld [vmem:[%s4] sm:$0x1]
      %v244 = vperm.slane %v242, 0
      %v246 = vadd.f32 %v240, %v244
      %v247 = vmax.f32 %v246, 0.0
      %v248 = vld [vmem:[#allocation12] sm:$0xff]
      %v249 = vld [vmem:[#allocation12 + $0x8] sm:$0xff]
      %v250 = vld [vmem:[#allocation12 + $0x10] sm:$0xff]
      %v251 = vld [vmem:[#allocation12 + $0x18] sm:$0xff]
      %v252 = vld [vmem:[%s6] sm:$0x1]
      %v254 = vperm.slane %v252, 0
      %v257 = vsel %vm139, %v247, 0
      %259 = vmatpush.msra.mxu0 0.0
      %260 = vmatpush.msra.mxu0 0.0
      %261 = vmatpush.msra.mxu0 0.0
      %262 = vmatpush.msra.mxu0 0.0
      %263 = vmatpush.msra.mxu0 0.0
      %264 = vmatpush.msra.mxu0 0.0
      %265 = vmatpush.msra.mxu0 0.0
      %266 = vmatpush.msra.mxu0 0.0
      %267 = vmatpush.msra.mxu0 0.0
      %268 = vmatpush.msra.mxu0 0.0
      %269 = vmatpush.msra.mxu0 0.0
      %270 = vmatpush.msra.mxu0 0.0
      %271 = vmatpush.msra.mxu0 %v251
      %272 = vmatpush.msra.mxu0 %v250
      %273 = vmatpush.msra.mxu0 %v249
      %274 = vmatpush.msra.mxu0 %v248
      %275 = vmatmul.f32.gmra.mxu0 %v257
      %v276 = vpop.f32.mrf.mxu0
      %v277 = vadd.f32 %v254, %v276
      %278 = vdwg.mxu0
      %v279 = vmax.f32 %v277, 0.0
      %v280 = vld [vmem:[#allocation13] sm:$0xff]
      %v281 = vld [vmem:[#allocation13 + $0x8] sm:$0xff]
      %v282 = vld [vmem:[#allocation13 + $0x10] sm:$0xff]
      %v283 = vld [vmem:[#allocation13 + $0x18] sm:$0xff]
      %v284 = vld [vmem:[%s8] sm:$0x1]
      %v286 = vperm.slane %v284, 0
      %v289 = vsel %vm139, %v279, 0
      %291 = vmatpush.msra.mxu0 0.0
      %292 = vmatpush.msra.mxu0 0.0
      %293 = vmatpush.msra.mxu0 0.0
      %294 = vmatpush.msra.mxu0 0.0
      %295 = vmatpush.msra.mxu0 0.0
      %296 = vmatpush.msra.mxu0 0.0
      %297 = vmatpush.msra.mxu0 0.0
      %298 = vmatpush.msra.mxu0 0.0
      %299 = vmatpush.msra.mxu0 0.0
      %300 = vmatpush.msra.mxu0 0.0
      %301 = vmatpush.msra.mxu0 0.0
      %302 = vmatpush.msra.mxu0 0.0
      %303 = vmatpush.msra.mxu0 %v283
      %304 = vmatpush.msra.mxu0 %v282
      %305 = vmatpush.msra.mxu0 %v281
      %306 = vmatpush.msra.mxu0 %v280
      %307 = vmatmul.f32.gmra.mxu0 %v289
      %v308 = vpop.f32.mrf.mxu0
      %v309 = vadd.f32 %v286, %v308
      %310 = vdwg.mxu0
      %311 = vst [vmem:[#allocation15] sm:$0x3] %v309
    $region69: #{tpu_custom_call.1} parent=1 // pred_fallthru
      _
    // Predicated region
    $region70: #{tpu_custom_call.1} parent=1 // pred_check
      _
    $region71: #{tpu_custom_call.1} parent=1 // pred_check_branch
      %313 = sbr.rel (0) target = $region73
    $region72: #{tpu_custom_call.1} parent=1 // pred_region
      %315 = vsyncadd [#allocation6], 0
      %s317 = sshll.u32 [#allocation15], 4
      %s318 = int_to_ptr.vmem [resolvable:$true] %s317
      %s319 = sshll.u32 %s9, 4
      %s320 = int_to_ptr.hbm [resolvable:$true] %s319
      %322 = dma.vmem_to_hbm [thread:$0]  %s318, 32, %s320, [#allocation6]
    $region73: #{tpu_custom_call.1} parent=1 // pred_fallthru
      _
    // Predicated region
    $region74: #{tpu_custom_call.1} parent=1 // pred_check
      _
    $region75: #{tpu_custom_call.1} parent=1 // pred_check_branch
      %324 = sbr.rel (0) target = $region77
    $region76: #{tpu_custom_call.1} parent=1 // pred_region
      %326 = dma.done [#allocation6], 32
    $region77: #{tpu_custom_call.1} parent=1 // pred_fallthru
      _
    %327 = vsyncpa [#allocation5], 1
    %328 = vsyncpa [#allocation8], 1
    %329 = vsyncpa [#allocation11], 1
    %330 = vsyncpa [#allocation14], 1
    %331 = vsyncpa [#allocation6], 1

// kernel: tpu_custom_call.1
$region0: #{tpu_custom_call.1}
  #allocation0 [shape = 'u32[]', space=smem, size = 0x4, offset = 0x4, fixed_abs, tag = 'smem constant byte address 0x4 - core index']
  #allocation1 [shape = 'u32[72,128]{1,0:T(1,128)}', space=vmem, size = 0x9000, scoped, tag = 'internal scratch']
  #allocation2 [shape = 'f32[2,32]{1,0:T(2,128)}', space=vmem, size = 0x400, scoped, tag = 'scratch operand']
  #allocation3 [shape = 'f32[2,32]{1,0:T(2,128)}', space=vmem, size = 0x400, scoped, tag = 'scratch operand']
  %s0 = inlined_call_operand.hbm [shape: f32[2,8,32], index: 0, kind: input, shape index: {}]
  %s1 = inlined_call_operand.hbm [shape: f32[2,8,32], index: 1, kind: input, shape index: {}]
  %s2 = inlined_call_operand.hbm [shape: f32[32,32], index: 2, kind: input, shape index: {}]
  %s3 = inlined_call_operand.hbm [shape: f32[32,32], index: 3, kind: input, shape index: {}]
  %s4 = inlined_call_operand.vmem [shape: f32[1,32], index: 4, kind: input, shape index: {}]
  %s5 = inlined_call_operand.hbm [shape: f32[32,32], index: 5, kind: input, shape index: {}]
  %s6 = inlined_call_operand.vmem [shape: f32[1,32], index: 6, kind: input, shape index: {}]
  %s7 = inlined_call_operand.hbm [shape: f32[32,128], index: 7, kind: input, shape index: {}]
  %s8 = inlined_call_operand.vmem [shape: f32[1,128], index: 8, kind: input, shape index: {}]
  %s9 = inlined_call_operand.hbm [shape: f32[2,128], index: 9, kind: output, shape index: {}]
  %s10 = sld [smem:[#allocation0]]
  $region78: #{tpu_custom_call.1} parent=0
    _
  %s12 = ssub.s32 1, %s10
  %s13 = scalar_select 0, %s12, %s10
  $region1: #{tpu_custom_call.1} parent=0
    #allocation4 [shape = 'u8[8192]{0}', space=vmem, size = 0x2000, scoped, tag = 'input window, operand 0, single buffered']
    #allocation5 [shape = 's32[1]{0}', space=sflag, size = 0x4, scoped, tag = 'scoped memory for tpu_custom_call.1']
    #allocation6 [shape = 's32[1]{0}', space=sflag, size = 0x4, scoped, tag = 'scoped memory for tpu_custom_call.1']
    #allocation7 [shape = 'u8[8192]{0}', space=vmem, size = 0x2000, scoped, tag = 'input window, operand 1, single buffered']
    #allocation8 [shape = 's32[1]{0}', space=sflag, size = 0x4, scoped, tag = 'scoped memory for tpu_custom_call.1']
    #allocation9 [shape = 'u8[16384]{0}', space=vmem, size = 0x4000, scoped, tag = 'input window, operand 2, single buffered']
    #allocation10 [shape = 'u8[16384]{0}', space=vmem, size = 0x4000, scoped, tag = 'input window, operand 3, single buffered']
    #allocation11 [shape = 's32[1]{0}', space=sflag, size = 0x4, scoped, tag = 'scoped memory for tpu_custom_call.1']
    #allocation12 [shape = 'u8[16384]{0}', space=vmem, size = 0x4000, scoped, tag = 'input window, operand 5, single buffered']
    #allocation13 [shape = 'u8[16384]{0}', space=vmem, size = 0x4000, scoped, tag = 'input window, operand 7, single buffered']
    #allocation14 [shape = 's32[1]{0}', space=sflag, size = 0x4, scoped, tag = 'scoped memory for tpu_custom_call.1']
    #allocation15 [shape = 'u8[1024]{0}', space=vmem, size = 0x400, scoped, tag = 'output window, operand 0, single buffered']
    %14 = vsyncpa [#allocation5], 0
    %15 = vsyncpa [#allocation8], 0
    %16 = vsyncpa [#allocation11], 0
    %17 = vsyncpa [#allocation14], 0
    %18 = vsyncpa [#allocation6], 0
    // Predicated region
    $region2: #{tpu_custom_call.1} parent=1 // pred_check
      _
    $region3: #{tpu_custom_call.1} parent=1 // pred_check_branch
      %20 = sbr.rel (0) target = $region5
    $region4: #{tpu_custom_call.1} parent=1 // pred_region
      %22 = vsyncadd [#allocation5], 0
      %s23 = sshll.u32 %s0, 4
      %s24 = int_to_ptr.hbm [resolvable:$true] %s23
      %s25 = sshll.u32 [#allocation4], 4
      %s26 = int_to_ptr.vmem [resolvable:$true] %s25
      %31 = dma.hbm_to_vmem [thread:$0]  %s24, 256, %s26, [#allocation5], 128, 128, 8
    $region5: #{tpu_custom_call.1} parent=1 // pred_fallthru
      _
    // Predicated region
    $region6: #{tpu_custom_call.1} parent=1 // pred_check
      _
    $region7: #{tpu_custom_call.1} parent=1 // pred_check_branch
      %33 = sbr.rel (0) target = $region9
    $region8: #{tpu_custom_call.1} parent=1 // pred_region
      %35 = vsyncadd [#allocation8], 0
      %s36 = sshll.u32 %s1, 4
      %s37 = int_to_ptr.hbm [resolvable:$true] %s36
      %s38 = sshll.u32 [#allocation7], 4
      %s39 = int_to_ptr.vmem [resolvable:$true] %s38
      %44 = dma.hbm_to_vmem [thread:$0]  %s37, 256, %s39, [#allocation8], 128, 128, 8
    $region9: #{tpu_custom_call.1} parent=1 // pred_fallthru
      _
    // Predicated region
    $region10: #{tpu_custom_call.1} parent=1 // pred_check
      _
    $region11: #{tpu_custom_call.1} parent=1 // pred_check_branch
      %46 = sbr.rel (0) target = $region13
    $region12: #{tpu_custom_call.1} parent=1 // pred_region
      %48 = vsyncadd [#allocation8], 0
      %s49 = sshll.u32 %s2, 4
      %s50 = int_to_ptr.hbm [resolvable:$true] %s49
      %s51 = sshll.u32 [#allocation9], 4
      %s52 = int_to_ptr.vmem [resolvable:$true] %s51
      %57 = dma.hbm_to_vmem [thread:$0]  %s50, 512, %s52, [#allocation8], 128, 128, 8
    $region13: #{tpu_custom_call.1} parent=1 // pred_fallthru
      _
    // Predicated region
    $region14: #{tpu_custom_call.1} parent=1 // pred_check
      _
    $region15: #{tpu_custom_call.1} parent=1 // pred_check_branch
      %59 = sbr.rel (0) target = $region17
    $region16: #{tpu_custom_call.1} parent=1 // pred_region
      %61 = vsyncadd [#allocation11], 0
      %s62 = sshll.u32 %s3, 4
      %s63 = int_to_ptr.hbm [resolvable:$true] %s62
      %s64 = sshll.u32 [#allocation10], 4
      %s65 = int_to_ptr.vmem [resolvable:$true] %s64
      %70 = dma.hbm_to_vmem [thread:$0]  %s63, 512, %s65, [#allocation11], 128, 128, 8
    $region17: #{tpu_custom_call.1} parent=1 // pred_fallthru
      _
    // Predicated region
    $region18: #{tpu_custom_call.1} parent=1 // pred_check
      _
    $region19: #{tpu_custom_call.1} parent=1 // pred_check_branch
      %72 = sbr.rel (0) target = $region21
    $region20: #{tpu_custom_call.1} parent=1 // pred_region
      _
    $region21: #{tpu_custom_call.1} parent=1 // pred_fallthru
      _
    // Predicated region
    $region22: #{tpu_custom_call.1} parent=1 // pred_check
      _
    $region23: #{tpu_custom_call.1} parent=1 // pred_check_branch
      %74 = sbr.rel (0) target = $region25
    $region24: #{tpu_custom_call.1} parent=1 // pred_region
      %76 = vsyncadd [#allocation11], 0
      %s77 = sshll.u32 %s5, 4
      %s78 = int_to_ptr.hbm [resolvable:$true] %s77
      %s79 = sshll.u32 [#allocation12], 4
      %s80 = int_to_ptr.vmem [resolvable:$true] %s79
      %85 = dma.hbm_to_vmem [thread:$0]  %s78, 512, %s80, [#allocation11], 128, 128, 8
    $region25: #{tpu_custom_call.1} parent=1 // pred_fallthru
      _
    // Predicated region
    $region26: #{tpu_custom_call.1} parent=1 // pred_check
      _
    $region27: #{tpu_custom_call.1} parent=1 // pred_check_branch
      %87 = sbr.rel (0) target = $region29
    $region28: #{tpu_custom_call.1} parent=1 // pred_region
      _
    $region29: #{tpu_custom_call.1} parent=1 // pred_fallthru
      _
    // Predicated region
    $region30: #{tpu_custom_call.1} parent=1 // pred_check
      _
    $region31: #{tpu_custom_call.1} parent=1 // pred_check_branch
      %89 = sbr.rel (0) target = $region33
    $region32: #{tpu_custom_call.1} parent=1 // pred_region
      %91 = vsyncadd [#allocation14], 0
      %s92 = sshll.u32 %s7, 4
      %s93 = int_to_ptr.hbm [resolvable:$true] %s92
      %s94 = sshll.u32 [#allocation13], 4
      %s95 = int_to_ptr.vmem [resolvable:$true] %s94
      %100 = dma.hbm_to_vmem [thread:$0]  %s93, 512, %s95, [#allocation14], 128, 128, 8
    $region33: #{tpu_custom_call.1} parent=1 // pred_fallthru
      _
    // Predicated region
    $region34: #{tpu_custom_call.1} parent=1 // pred_check
      _
    $region35: #{tpu_custom_call.1} parent=1 // pred_check_branch
      %102 = sbr.rel (0) target = $region37
    $region36: #{tpu_custom_call.1} parent=1 // pred_region
      _
    $region37: #{tpu_custom_call.1} parent=1 // pred_fallthru
      _
    // Predicated region
    $region38: #{tpu_custom_call.1} parent=1 // pred_check
      _
    $region39: #{tpu_custom_call.1} parent=1 // pred_check_branch
      %104 = sbr.rel (0) target = $region41
    $region40: #{tpu_custom_call.1} parent=1 // pred_region
      %106 = dma.done [#allocation5], 256
    $region41: #{tpu_custom_call.1} parent=1 // pred_fallthru
      _
    // Predicated region
    $region42: #{tpu_custom_call.1} parent=1 // pred_check
      _
    $region43: #{tpu_custom_call.1} parent=1 // pred_check_branch
      %108 = sbr.rel (0) target = $region45
    $region44: #{tpu_custom_call.1} parent=1 // pred_region
      %110 = dma.done [#allocation8], 256
    $region45: #{tpu_custom_call.1} parent=1 // pred_fallthru
      _
    // Predicated region
    $region46: #{tpu_custom_call.1} parent=1 // pred_check
      _
    $region47: #{tpu_custom_call.1} parent=1 // pred_check_branch
      %112 = sbr.rel (0) target = $region49
    $region48: #{tpu_custom_call.1} parent=1 // pred_region
      %114 = dma.done [#allocation8], 512
    $region49: #{tpu_custom_call.1} parent=1 // pred_fallthru
      _
    // Predicated region
    $region50: #{tpu_custom_call.1} parent=1 // pred_check
      _
    $region51: #{tpu_custom_call.1} parent=1 // pred_check_branch
      %116 = sbr.rel (0) target = $region53
    $region52: #{tpu_custom_call.1} parent=1 // pred_region
      %118 = dma.done [#allocation11], 512
    $region53: #{tpu_custom_call.1} parent=1 // pred_fallthru
      _
    // Predicated region
    $region54: #{tpu_custom_call.1} parent=1 // pred_check
      _
    $region55: #{tpu_custom_call.1} parent=1 // pred_check_branch
      %120 = sbr.rel (0) target = $region57
    $region56: #{tpu_custom_call.1} parent=1 // pred_region
      %122 = dma.done [#allocation11], 512
    $region57: #{tpu_custom_call.1} parent=1 // pred_fallthru
      _
    // Predicated region
    $region58: #{tpu_custom_call.1} parent=1 // pred_check
      _
    $region59: #{tpu_custom_call.1} parent=1 // pred_check_branch
      %124 = sbr.rel (0) target = $region61
    $region60: #{tpu_custom_call.1} parent=1 // pred_region
      %126 = dma.done [#allocation14], 512
    $region61: #{tpu_custom_call.1} parent=1 // pred_fallthru
      _
    %p127 = scmp.eq.s32.totalorder 0, 0
    // Predicated region
    $region62: #{tpu_custom_call.1} parent=1 // pred_check
      %p128 = pneg %p127
    $region63: #{tpu_custom_call.1} parent=1 // pred_check_branch
      %130 = sbr.rel (%p128) target = $region65
    $region64: #{tpu_custom_call.1} parent=1 // pred_region
      %vm131 = vcmask 254976
      %132 = vst.msk [vmem:[#allocation2] sm:$0x3] %vm131, 0.0
      %133 = vst.msk [vmem:[#allocation3] sm:$0x3] %vm131, 0.0
    $region65: #{tpu_custom_call.1} parent=1 // pred_fallthru
      _
    %v134 = vld [vmem:[#allocation4] sm:$0xff]
    %v135 = vld [vmem:[#allocation4 + $0x8] sm:$0xff]
    %v136 = vld [vmem:[#allocation7] sm:$0xff]
    %v137 = vld [vmem:[#allocation7 + $0x8] sm:$0xff]
    %v138 = vld [vmem:[#allocation2] sm:$0x3]
    %vm139 = vcmask 261120
    %v140 = vsel %vm139, %v134, 0.0
    %v141 = vrot.slane %v140, 4
    %v142 = vadd.f32 %v140, %v141
    %v143 = vrot.slane %v142, 2
    %v144 = vadd.f32 %v142, %v143
    %v145 = vrot.slane %v144, 1
    %v146 = vadd.f32 %v144, %v145
    %v147 = vsel %vm139, %v135, 0.0
    %v148 = vrot.slane %v147, 4
    %v149 = vadd.f32 %v147, %v148
    %v150 = vrot.slane %v149, 2
    %v151 = vadd.f32 %v149, %v150
    %v152 = vrot.slane %v151, 1
    %v153 = vadd.f32 %v151, %v152
    %vm156 = vcmask 1041409
    %v157 = vsel %vm156, %v153, %v146
    %v159 = vadd.f32 %v138, %v157
    %vm160 = vcmask 254976
    %161 = vst.msk [vmem:[#allocation2] sm:$0x3] %vm160, %v159
    %v162 = vld [vmem:[#allocation3] sm:$0x3]
    %v163 = vsel %vm139, %v136, 0.0
    %v164 = vrot.slane %v163, 4
    %v165 = vadd.f32 %v163, %v164
    %v166 = vrot.slane %v165, 2
    %v167 = vadd.f32 %v165, %v166
    %v168 = vrot.slane %v167, 1
    %v169 = vadd.f32 %v167, %v168
    %v170 = vsel %vm139, %v137, 0.0
    %v171 = vrot.slane %v170, 4
    %v172 = vadd.f32 %v170, %v171
    %v173 = vrot.slane %v172, 2
    %v174 = vadd.f32 %v172, %v173
    %v175 = vrot.slane %v174, 1
    %v176 = vadd.f32 %v174, %v175
    %v179 = vsel %vm156, %v176, %v169
    %v181 = vadd.f32 %v162, %v179
    %182 = vst.msk [vmem:[#allocation3] sm:$0x3] %vm160, %v181
    // Predicated region
    $region66: #{tpu_custom_call.1} parent=1 // pred_check
      %p183 = pneg %p127
    $region67: #{tpu_custom_call.1} parent=1 // pred_check_branch
      %185 = sbr.rel (%p183) target = $region69
    $region68: #{tpu_custom_call.1} parent=1 // pred_region
      %v186 = vld [vmem:[#allocation2] sm:$0x3]
      %v187 = vld [vmem:[#allocation3] sm:$0x3]
      %v188 = vld [vmem:[#allocation9] sm:$0xff]
      %v189 = vld [vmem:[#allocation9 + $0x8] sm:$0xff]
      %v190 = vld [vmem:[#allocation9 + $0x10] sm:$0xff]
      %v191 = vld [vmem:[#allocation9 + $0x18] sm:$0xff]
      %v192 = vld [vmem:[#allocation10] sm:$0xff]
      %v193 = vld [vmem:[#allocation10 + $0x8] sm:$0xff]
      %v194 = vld [vmem:[#allocation10 + $0x10] sm:$0xff]
      %v195 = vld [vmem:[#allocation10 + $0x18] sm:$0xff]
      %v197 = vsel %vm139, %v187, 0
      %199 = vmatpush.msra.mxu0 0.0
      %200 = vmatpush.msra.mxu0 0.0
      %201 = vmatpush.msra.mxu0 0.0
      %202 = vmatpush.msra.mxu0 0.0
      %203 = vmatpush.msra.mxu0 0.0
      %204 = vmatpush.msra.mxu0 0.0
      %205 = vmatpush.msra.mxu0 0.0
      %206 = vmatpush.msra.mxu0 0.0
      %207 = vmatpush.msra.mxu0 0.0
      %208 = vmatpush.msra.mxu0 0.0
      %209 = vmatpush.msra.mxu0 0.0
      %210 = vmatpush.msra.mxu0 0.0
      %211 = vmatpush.msra.mxu0 %v195
      %212 = vmatpush.msra.mxu0 %v194
      %213 = vmatpush.msra.mxu0 %v193
      %214 = vmatpush.msra.mxu0 %v192
      %215 = vmatmul.f32.gmra.mxu0 %v197
      %v216 = vpop.f32.mrf.mxu0
      %v217 = vadd.f32 0.0, %v216
      %218 = vdwg.mxu0
      %v220 = vsel %vm139, %v186, 0
      %222 = vmatpush.msra.mxu0 0.0
      %223 = vmatpush.msra.mxu0 0.0
      %224 = vmatpush.msra.mxu0 0.0
      %225 = vmatpush.msra.mxu0 0.0
      %226 = vmatpush.msra.mxu0 0.0
      %227 = vmatpush.msra.mxu0 0.0
      %228 = vmatpush.msra.mxu0 0.0
      %229 = vmatpush.msra.mxu0 0.0
      %230 = vmatpush.msra.mxu0 0.0
      %231 = vmatpush.msra.mxu0 0.0
      %232 = vmatpush.msra.mxu0 0.0
      %233 = vmatpush.msra.mxu0 0.0
      %234 = vmatpush.msra.mxu0 %v191
      %235 = vmatpush.msra.mxu0 %v190
      %236 = vmatpush.msra.mxu0 %v189
      %237 = vmatpush.msra.mxu0 %v188
      %238 = vmatmul.f32.gmra.mxu0 %v220
      %v239 = vpop.f32.mrf.mxu0
      %v240 = vadd.f32 %v217, %v239
      %241 = vdwg.mxu0
      %v242 = vld [vmem:[%s4] sm:$0x1]
      %v244 = vperm.slane %v242, 0
      %v246 = vadd.f32 %v240, %v244
      %v247 = vmax.f32 %v246, 0.0
      %v248 = vld [vmem:[#allocation12] sm:$0xff]
      %v249 = vld [vmem:[#allocation12 + $0x8] sm:$0xff]
      %v250 = vld [vmem:[#allocation12 + $0x10] sm:$0xff]
      %v251 = vld [vmem:[#allocation12 + $0x18] sm:$0xff]
      %v252 = vld [vmem:[%s6] sm:$0x1]
      %v254 = vperm.slane %v252, 0
      %v257 = vsel %vm139, %v247, 0
      %259 = vmatpush.msra.mxu0 0.0
      %260 = vmatpush.msra.mxu0 0.0
      %261 = vmatpush.msra.mxu0 0.0
      %262 = vmatpush.msra.mxu0 0.0
      %263 = vmatpush.msra.mxu0 0.0
      %264 = vmatpush.msra.mxu0 0.0
      %265 = vmatpush.msra.mxu0 0.0
      %266 = vmatpush.msra.mxu0 0.0
      %267 = vmatpush.msra.mxu0 0.0
      %268 = vmatpush.msra.mxu0 0.0
      %269 = vmatpush.msra.mxu0 0.0
      %270 = vmatpush.msra.mxu0 0.0
      %271 = vmatpush.msra.mxu0 %v251
      %272 = vmatpush.msra.mxu0 %v250
      %273 = vmatpush.msra.mxu0 %v249
      %274 = vmatpush.msra.mxu0 %v248
      %275 = vmatmul.f32.gmra.mxu0 %v257
      %v276 = vpop.f32.mrf.mxu0
      %v277 = vadd.f32 %v254, %v276
      %278 = vdwg.mxu0
      %v279 = vmax.f32 %v277, 0.0
      %v280 = vld [vmem:[#allocation13] sm:$0xff]
      %v281 = vld [vmem:[#allocation13 + $0x8] sm:$0xff]
      %v282 = vld [vmem:[#allocation13 + $0x10] sm:$0xff]
      %v283 = vld [vmem:[#allocation13 + $0x18] sm:$0xff]
      %v284 = vld [vmem:[%s8] sm:$0x1]
      %v286 = vperm.slane %v284, 0
      %v289 = vsel %vm139, %v279, 0
      %291 = vmatpush.msra.mxu0 0.0
      %292 = vmatpush.msra.mxu0 0.0
      %293 = vmatpush.msra.mxu0 0.0
      %294 = vmatpush.msra.mxu0 0.0
      %295 = vmatpush.msra.mxu0 0.0
      %296 = vmatpush.msra.mxu0 0.0
      %297 = vmatpush.msra.mxu0 0.0
      %298 = vmatpush.msra.mxu0 0.0
      %299 = vmatpush.msra.mxu0 0.0
      %300 = vmatpush.msra.mxu0 0.0
      %301 = vmatpush.msra.mxu0 0.0
      %302 = vmatpush.msra.mxu0 0.0
      %303 = vmatpush.msra.mxu0 %v283
      %304 = vmatpush.msra.mxu0 %v282
      %305 = vmatpush.msra.mxu0 %v281
      %306 = vmatpush.msra.mxu0 %v280
      %307 = vmatmul.f32.gmra.mxu0 %v289
      %v308 = vpop.f32.mrf.mxu0
      %v309 = vadd.f32 %v286, %v308
      %310 = vdwg.mxu0
      %311 = vst [vmem:[#allocation15] sm:$0x3] %v309
    $region69: #{tpu_custom_call.1} parent=1 // pred_fallthru
      _
    // Predicated region
    $region70: #{tpu_custom_call.1} parent=1 // pred_check
      _
    $region71: #{tpu_custom_call.1} parent=1 // pred_check_branch
      %313 = sbr.rel (0) target = $region73
    $region72: #{tpu_custom_call.1} parent=1 // pred_region
      %315 = vsyncadd [#allocation6], 0
      %s317 = sshll.u32 [#allocation15], 4
      %s318 = int_to_ptr.vmem [resolvable:$true] %s317
      %s319 = sshll.u32 %s9, 4
      %s320 = int_to_ptr.hbm [resolvable:$true] %s319
      %322 = dma.vmem_to_hbm [thread:$0]  %s318, 32, %s320, [#allocation6]
    $region73: #{tpu_custom_call.1} parent=1 // pred_fallthru
      _
    // Predicated region
    $region74: #{tpu_custom_call.1} parent=1 // pred_check
      _
    $region75: #{tpu_custom_call.1} parent=1 // pred_check_branch
      %324 = sbr.rel (0) target = $region77
    $region76: #{tpu_custom_call.1} parent=1 // pred_region
      %326 = dma.done [#allocation6], 32
    $region77: #{tpu_custom_call.1} parent=1 // pred_fallthru
      _
    %327 = vsyncpa [#allocation5], 1
    %328 = vsyncpa [#allocation8], 1
    %329 = vsyncpa [#allocation11], 1
    %330 = vsyncpa [#allocation14], 1
    %331 = vsyncpa [#allocation6], 1

</llo_original>
